<compile_context>
chip_gen: v7x
topology: tpu7x:2x2x1
jax: 0.10.0
libtpu: 0.0.40
codegen_flags: <defaults>
</compile_context>

<pallas_src>
import math

import jax
import jax.numpy as jnp
from jax.experimental import pallas as pl
from jax.experimental.pallas import tpu as pltpu


_LANES = 128
# Target batch rows per grid step. At 48 B of HBM per row this is ~3 MiB per
# step -> DMA time >> per-step pipeline overhead on v5e/v6e/v7x, while the
# per-step VMEM footprint stays ~16 MiB.
_TB_ROWS = 65536


def _round_up(x, m):
    return ((x + m - 1) // m) * m


def _pack_factor(sf):
    """Rows packed per lane-dense row: smallest P with (P * sf) % 128 == 0."""
    return _LANES // math.gcd(sf, _LANES)


def network_kernel(x_ref, w0_ref, b0_ref, w1_ref, b1_ref, w2_ref, b2_ref, out_ref):
    """Packed forward pass: three lane-dense matmuls + ReLUs.

    x_ref   : (r_blk, P*SF)  -- P batch rows packed per sublane row.
    w*_ref  : block-diagonal weights (kron(I_P, W_layer)), resident in VMEM.
    out_ref : (r_blk, P)     -- one scalar per packed batch row.
    """
    x = x_ref[...]

    # conv1 == full-(S,F)-window dot per output channel, then ReLU.
    h0 = jnp.dot(x, w0_ref[...], preferred_element_type=jnp.float32) + b0_ref[...]
    h0 = jnp.maximum(h0, 0.0)

    # fc1 + ReLU (still packed: each group of 3 columns is one batch row).
    h1 = jnp.dot(h0, w1_ref[...], preferred_element_type=jnp.float32) + b1_ref[...]
    h1 = jnp.maximum(h1, 0.0)

    # fc2 -> (r_blk, P): one scalar per packed batch row.
    out_ref[...] = (
        jnp.dot(h1, w2_ref[...], preferred_element_type=jnp.float32) + b2_ref[...]
    )


def prepare_params(params):
    """One-time expansion of PyTorch-layout params into packed kernel layout.

    Each layer weight is expanded to kron(I_P, W) so the layer applies
    directly to the lane-dense packed activation layout. Total ~0.65 MiB;
    stays resident in VMEM across the whole grid.
    """
    wc, bc, w1, b1, w2, b2 = params
    out_ch = wc.shape[0]                        # 3
    sf = wc.shape[2] * wc.shape[3]              # S*F
    p = _pack_factor(sf)
    eye = jnp.eye(p, dtype=jnp.float32)

    wc_m = wc.reshape(out_ch, sf).T.astype(jnp.float32)            # (SF, 3)
    w0_p = jnp.kron(eye, wc_m)                                     # (P*SF, P*3)
    b0_p = jnp.tile(bc.astype(jnp.float32), p).reshape(1, p * out_ch)

    w1_p = jnp.kron(eye, w1.T.astype(jnp.float32))                 # (P*3, P*30)
    b1_p = jnp.tile(b1.astype(jnp.float32), p).reshape(1, p * w1.shape[0])

    w2_p = jnp.kron(eye, w2.T.astype(jnp.float32))                 # (P*30, P*1)
    b2_p = jnp.tile(b2.astype(jnp.float32), p).reshape(1, p * w2.shape[0])

    return (w0_p, b0_p, w1_p, b1_p, w2_p, b2_p)


@jax.jit
def network_forward(x_nchw, prepared_params):
    """x_nchw: (B, 1, S, F) float32, matching the PyTorch NCHW conv input."""
    b = x_nchw.shape[0]
    s, f = x_nchw.shape[2], x_nchw.shape[3]
    sf = s * f
    p = _pack_factor(sf)
    w = p * sf                                   # packed row width (mult of 128)

    x_flat = x_nchw.reshape(b, sf).astype(jnp.float32)

    # Pad the batch only to a multiple of the pack factor (<= P-1 rows).
    # Aligned batches (B % 32 == 0) take the copy-free path: the reshape
    # below is a pure metadata change on the same contiguous buffer.
    b_pad = _round_up(b, p)
    if b_pad != b:
        # TODO(synk): producers that align B to the pack factor skip this copy.
        x_flat = jnp.pad(x_flat, ((0, b_pad - b), (0, 0)))
    r = b_pad // p
    x_packed = x_flat.reshape(r, w)

    w0_p, b0_p, w1_p, b1_p, w2_p, b2_p = prepared_params

    # Packed rows per grid step: target _TB_ROWS batch rows, capped so that
    # mid-size batches still give >= 2 steps (keeps both v7x TensorCores busy).
    r_full = max(_TB_ROWS // p, 8)
    if r <= 8:
        r_blk = r                                # single full-extent block
    else:
        r_blk = min(r_full, _round_up(pl.cdiv(r, 2), 8))
    grid = (pl.cdiv(r, r_blk),)                  # partial last block is fine

    def resident(a):
        return pl.BlockSpec(a.shape, lambda i: (0, 0))

    out_packed = pl.pallas_call(
        network_kernel,
        out_shape=jax.ShapeDtypeStruct((r, p), jnp.float32),
        grid=grid,
        in_specs=[
            pl.BlockSpec((r_blk, w), lambda i: (i, 0)),   # stream packed rows
            resident(w0_p), resident(b0_p),               # weights stay resident
            resident(w1_p), resident(b1_p),
            resident(w2_p), resident(b2_p),
        ],
        out_specs=pl.BlockSpec((r_blk, p), lambda i: (i, 0)),
        compiler_params=pltpu.CompilerParams(
            dimension_semantics=("parallel",),
            vmem_limit_bytes=48 * 1024 * 1024,
        ),
    )(x_packed, w0_p, b0_p, w1_p, b1_p, w2_p, b2_p)

    # (R, P) -> (B_pad,) -> drop pad rows -> (B, 1)
    return out_packed.reshape(b_pad)[:b].reshape(b, 1)


def make_params(key, sequence_length, n_features):
    """Deterministic synthetic parameters with PyTorch-layout shapes."""
    ks = jax.random.split(key, 6)
    wc = 0.1 * jax.random.normal(ks[0], (3, 1, sequence_length, n_features), jnp.float32)
    bc = 0.1 * jax.random.normal(ks[1], (3,), jnp.float32)
    w1 = 0.1 * jax.random.normal(ks[2], (30, 3), jnp.float32)
    b1 = 0.1 * jax.random.normal(ks[3], (30,), jnp.float32)
    w2 = 0.1 * jax.random.normal(ks[4], (1, 30), jnp.float32)
    b2 = 0.1 * jax.random.normal(ks[5], (1,), jnp.float32)
    return (wc, bc, w1, b1, w2, b2)


def reference_forward(x_nchw, params):
    """Pure-JAX reference mirroring the PyTorch semantics."""
    wc, bc, w1, b1, w2, b2 = params
    b, _, s, f = x_nchw.shape
    x_flat = x_nchw.reshape(b, s * f)
    conv = x_flat @ wc.reshape(wc.shape[0], s * f).T + bc   # (B,3) == (B,3,1,1) squeezed
    h0 = jnp.maximum(conv, 0.0)
    h1 = jnp.maximum(h0 @ w1.T + b1, 0.0)
    return h1 @ w2.T + b2


if __name__ == "__main__":
    sequence_length = 3
    n_features = 4

    root = jax.random.PRNGKey(0)
    k_params, k_x = jax.random.split(root)

    params = make_params(k_params, sequence_length, n_features)
    prepped = prepare_params(params)

    # Batch sizes exercising: tiny single-block, aligned multi-step (no pad,
    # free packing reshape), and ragged batch (pad to pack factor + partial
    # last grid block).
    for i, batch in enumerate((8, 2048, 4100)):
        x = jax.random.normal(
            jax.random.fold_in(k_x, i),
            (batch, 1, sequence_length, n_features),
            jnp.float32,
        )
        out = jax.block_until_ready(network_forward(x, prepped))
        ref = reference_forward(x, params)
        assert out.shape == (batch, 1), out.shape
        err = float(jnp.max(jnp.abs(out - ref)))
        # Loose enough for default (bf16-pass) MXU precision, far tighter
        # than any structural error would produce.
        assert jnp.allclose(out, ref, atol=1e-3, rtol=1e-3), (
            f"batch={batch} max_abs_err={err}"
        )

    print("KERNEL_OK")
</pallas_src>

<mosaic_0001>
module attributes {stable_mosaic.version = 11 : i64} {
  func.func @network_kernel(%arg0: i32, %arg1: memref<1x384xf32, #tpu.memory_space<vmem>>, %arg2: memref<384x96xf32, #tpu.memory_space<vmem>>, %arg3: memref<1x96xf32, #tpu.memory_space<vmem>>, %arg4: memref<96x960xf32, #tpu.memory_space<vmem>>, %arg5: memref<1x960xf32, #tpu.memory_space<vmem>>, %arg6: memref<960x32xf32, #tpu.memory_space<vmem>>, %arg7: memref<1x32xf32, #tpu.memory_space<vmem>>, %arg8: memref<1x32xf32, #tpu.memory_space<vmem>>) attributes {dimension_semantics = [#tpu.dimension_semantics<parallel>], iteration_bounds = array<i64: 1>, scalar_prefetch = 0 : i64, scratch_operands = 0 : i64, tpu.core_type = #tpu.core_type<tc>, window_params = [{transform_indices = @transform_0, window_bounds = array<i64: 1, 384>}, {pipeline_mode = #tpu.pipeline_mode<synchronous>, transform_indices = @transform_1, window_bounds = array<i64: 384, 96>}, {pipeline_mode = #tpu.pipeline_mode<synchronous>, transform_indices = @transform_2, window_bounds = array<i64: 1, 96>}, {pipeline_mode = #tpu.pipeline_mode<synchronous>, transform_indices = @transform_3, window_bounds = array<i64: 96, 960>}, {pipeline_mode = #tpu.pipeline_mode<synchronous>, transform_indices = @transform_4, window_bounds = array<i64: 1, 960>}, {pipeline_mode = #tpu.pipeline_mode<synchronous>, transform_indices = @transform_5, window_bounds = array<i64: 960, 32>}, {pipeline_mode = #tpu.pipeline_mode<synchronous>, transform_indices = @transform_6, window_bounds = array<i64: 1, 32>}, {transform_indices = @transform_7, window_bounds = array<i64: 1, 32>}]} {
    %c0 = arith.constant 0 : index
    %c0_0 = arith.constant 0 : index
    %0 = vector.load %arg1[%c0, %c0_0] : memref<1x384xf32, #tpu.memory_space<vmem>>, vector<1x384xf32>
    %c0_1 = arith.constant 0 : index
    %c0_2 = arith.constant 0 : index
    %1 = vector.load %arg2[%c0_1, %c0_2] : memref<384x96xf32, #tpu.memory_space<vmem>>, vector<384x96xf32>
    %cst = arith.constant dense<0.000000e+00> : vector<1x96xf32>
    %2 = tpu.matmul %0, %1, %cst {dimension_numbers = #tpu.dot_dimension_numbers<[1], [0], [0], [1], [0, 0, 1, 1], [], []>} : vector<1x384xf32>, vector<384x96xf32>, vector<1x96xf32> -> vector<1x96xf32>
    %c0_3 = arith.constant 0 : index
    %c0_4 = arith.constant 0 : index
    %3 = vector.load %arg3[%c0_3, %c0_4] : memref<1x96xf32, #tpu.memory_space<vmem>>, vector<1x96xf32>
    %4 = arith.addf %2, %3 : vector<1x96xf32>
    %cst_5 = arith.constant 0.000000e+00 : f32
    %5 = vector.broadcast %cst_5 : f32 to vector<1x96xf32>
    %6 = arith.maximumf %4, %5 : vector<1x96xf32>
    %c0_6 = arith.constant 0 : index
    %c0_7 = arith.constant 0 : index
    %7 = vector.load %arg4[%c0_6, %c0_7] : memref<96x960xf32, #tpu.memory_space<vmem>>, vector<96x960xf32>
    %cst_8 = arith.constant dense<0.000000e+00> : vector<1x960xf32>
    %8 = tpu.matmul %6, %7, %cst_8 {dimension_numbers = #tpu.dot_dimension_numbers<[1], [0], [0], [1], [0, 0, 1, 1], [], []>} : vector<1x96xf32>, vector<96x960xf32>, vector<1x960xf32> -> vector<1x960xf32>
    %c0_9 = arith.constant 0 : index
    %c0_10 = arith.constant 0 : index
    %9 = vector.load %arg5[%c0_9, %c0_10] : memref<1x960xf32, #tpu.memory_space<vmem>>, vector<1x960xf32>
    %10 = arith.addf %8, %9 : vector<1x960xf32>
    %cst_11 = arith.constant 0.000000e+00 : f32
    %11 = vector.broadcast %cst_11 : f32 to vector<1x960xf32>
    %12 = arith.maximumf %10, %11 : vector<1x960xf32>
    %c0_12 = arith.constant 0 : index
    %c0_13 = arith.constant 0 : index
    %13 = vector.load %arg6[%c0_12, %c0_13] : memref<960x32xf32, #tpu.memory_space<vmem>>, vector<960x32xf32>
    %cst_14 = arith.constant dense<0.000000e+00> : vector<1x32xf32>
    %14 = tpu.matmul %12, %13, %cst_14 {dimension_numbers = #tpu.dot_dimension_numbers<[1], [0], [0], [1], [0, 0, 1, 1], [], []>} : vector<1x960xf32>, vector<960x32xf32>, vector<1x32xf32> -> vector<1x32xf32>
    %c0_15 = arith.constant 0 : index
    %c0_16 = arith.constant 0 : index
    %15 = vector.load %arg7[%c0_15, %c0_16] : memref<1x32xf32, #tpu.memory_space<vmem>>, vector<1x32xf32>
    %16 = arith.addf %14, %15 : vector<1x32xf32>
    %c0_17 = arith.constant 0 : index
    %c0_18 = arith.constant 0 : index
    %17 = vector.load %arg8[%c0_17, %c0_18] : memref<1x32xf32, #tpu.memory_space<vmem>>, vector<1x32xf32>
    tpu.vector_store %arg8[%c0_17, %c0_18], %16 {strides = array<i32>} : memref<1x32xf32, #tpu.memory_space<vmem>>, vector<1x32xf32>,
    return
  }
  func.func @transform_0(%arg0: i32) -> (i32, i32) {
    %c0_i32 = arith.constant 0 : i32
    %c0_i32_0 = arith.constant 0 : i32
    return %arg0, %c0_i32 : i32, i32
  }
  func.func @transform_1(%arg0: i32) -> (i32, i32) {
    %c0_i32 = arith.constant 0 : i32
    %c0_i32_0 = arith.constant 0 : i32
    %c0_i32_1 = arith.constant 0 : i32
    return %c0_i32, %c0_i32_0 : i32, i32
  }
  func.func @transform_2(%arg0: i32) -> (i32, i32) {
    %c0_i32 = arith.constant 0 : i32
    %c0_i32_0 = arith.constant 0 : i32
    %c0_i32_1 = arith.constant 0 : i32
    return %c0_i32, %c0_i32_0 : i32, i32
  }
  func.func @transform_3(%arg0: i32) -> (i32, i32) {
    %c0_i32 = arith.constant 0 : i32
    %c0_i32_0 = arith.constant 0 : i32
    %c0_i32_1 = arith.constant 0 : i32
    return %c0_i32, %c0_i32_0 : i32, i32
  }
  func.func @transform_4(%arg0: i32) -> (i32, i32) {
    %c0_i32 = arith.constant 0 : i32
    %c0_i32_0 = arith.constant 0 : i32
    %c0_i32_1 = arith.constant 0 : i32
    return %c0_i32, %c0_i32_0 : i32, i32
  }
  func.func @transform_5(%arg0: i32) -> (i32, i32) {
    %c0_i32 = arith.constant 0 : i32
    %c0_i32_0 = arith.constant 0 : i32
    %c0_i32_1 = arith.constant 0 : i32
    return %c0_i32, %c0_i32_0 : i32, i32
  }
  func.func @transform_6(%arg0: i32) -> (i32, i32) {
    %c0_i32 = arith.constant 0 : i32
    %c0_i32_0 = arith.constant 0 : i32
    %c0_i32_1 = arith.constant 0 : i32
    return %c0_i32, %c0_i32_0 : i32, i32
  }
  func.func @transform_7(%arg0: i32) -> (i32, i32) {
    %c0_i32 = arith.constant 0 : i32
    %c0_i32_0 = arith.constant 0 : i32
    return %arg0, %c0_i32 : i32, i32
  }
}

</mosaic_0001>

<llo_original>
// kernel: network_forward.1
$region0: #{network_forward.1}
  #allocation0 [shape = 'u32[]', space=smem, size = 0x4, offset = 0x4, fixed_abs, tag = 'smem constant byte address 0x4 - core index']
  #allocation1 [shape = 'u32[144,128]{1,0:T(1,128)}', space=vmem, size = 0x12000, scoped, tag = 'internal scratch']
  %s0 = inlined_call_operand.vmem [shape: f32[1,384], index: 0, kind: input, shape index: {}]
  %s1 = inlined_call_operand.vmem [shape: f32[384,96], index: 1, kind: input, shape index: {}]
  %s2 = inlined_call_operand.vmem [shape: f32[1,96], index: 2, kind: input, shape index: {}]
  %s3 = inlined_call_operand.vmem [shape: f32[96,960], index: 3, kind: input, shape index: {}]
  %s4 = inlined_call_operand.vmem [shape: f32[1,960], index: 4, kind: input, shape index: {}]
  %s5 = inlined_call_operand.vmem [shape: f32[960,32], index: 5, kind: input, shape index: {}]
  %s6 = inlined_call_operand.vmem [shape: f32[1,32], index: 6, kind: input, shape index: {}]
  %s7 = inlined_call_operand.vmem [shape: f32[1,32], index: 7, kind: output, shape index: {}]
  %s8 = sld [smem:[#allocation0]]
  $region38: #{network_forward.1} parent=0
    _
  %s10 = ssub.s32 1, %s8
  %s11 = scalar_select 0, %s10, %s8
  // Predicated region
  $region2: #{network_forward.1} parent=0 // pred_check
    _
  $region3: #{network_forward.1} parent=0 // pred_check_branch
    %13 = sbr.rel (0) target = $region5
  $region4: #{network_forward.1} parent=0 // pred_region
    _
  $region5: #{network_forward.1} parent=0 // pred_fallthru
    _
  // Predicated region
  $region6: #{network_forward.1} parent=0 // pred_check
    _
  $region7: #{network_forward.1} parent=0 // pred_check_branch
    %15 = sbr.rel (0) target = $region9
  $region8: #{network_forward.1} parent=0 // pred_region
    _
  $region9: #{network_forward.1} parent=0 // pred_fallthru
    _
  // Predicated region
  $region10: #{network_forward.1} parent=0 // pred_check
    _
  $region11: #{network_forward.1} parent=0 // pred_check_branch
    %17 = sbr.rel (0) target = $region13
  $region12: #{network_forward.1} parent=0 // pred_region
    _
  $region13: #{network_forward.1} parent=0 // pred_fallthru
    _
  // Predicated region
  $region14: #{network_forward.1} parent=0 // pred_check
    _
  $region15: #{network_forward.1} parent=0 // pred_check_branch
    %19 = sbr.rel (0) target = $region17
  $region16: #{network_forward.1} parent=0 // pred_region
    _
  $region17: #{network_forward.1} parent=0 // pred_fallthru
    _
  // Predicated region
  $region18: #{network_forward.1} parent=0 // pred_check
    _
  $region19: #{network_forward.1} parent=0 // pred_check_branch
    %21 = sbr.rel (0) target = $region21
  $region20: #{network_forward.1} parent=0 // pred_region
    _
  $region21: #{network_forward.1} parent=0 // pred_fallthru
    _
  // Predicated region
  $region22: #{network_forward.1} parent=0 // pred_check
    _
  $region23: #{network_forward.1} parent=0 // pred_check_branch
    %23 = sbr.rel (0) target = $region25
  $region24: #{network_forward.1} parent=0 // pred_region
    _
  $region25: #{network_forward.1} parent=0 // pred_fallthru
    _
  // Predicated region
  $region26: #{network_forward.1} parent=0 // pred_check
    _
  $region27: #{network_forward.1} parent=0 // pred_check_branch
    %25 = sbr.rel (0) target = $region29
  $region28: #{network_forward.1} parent=0 // pred_region
    _
  $region29: #{network_forward.1} parent=0 // pred_fallthru
    _
  %v26 = vld [vmem:[%s0] sm:$0x7]
  %v27 = vld [vmem:[%s1] sm:$0xff]
  %v28 = vld [vmem:[%s1 + $0x8] sm:$0xff]
  %v29 = vld [vmem:[%s1 + $0x10] sm:$0xff]
  %v30 = vld [vmem:[%s1 + $0x18] sm:$0xff]
  %v31 = vld [vmem:[%s1 + $0x20] sm:$0xff]
  %v32 = vld [vmem:[%s1 + $0x28] sm:$0xff]
  %v33 = vld [vmem:[%s1 + $0x30] sm:$0xff]
  %v34 = vld [vmem:[%s1 + $0x38] sm:$0xff]
  %v35 = vld [vmem:[%s1 + $0x40] sm:$0xff]
  %v36 = vld [vmem:[%s1 + $0x48] sm:$0xff]
  %v37 = vld [vmem:[%s1 + $0x50] sm:$0xff]
  %v38 = vld [vmem:[%s1 + $0x58] sm:$0xff]
  %v39 = vld [vmem:[%s1 + $0x60] sm:$0xff]
  %v40 = vld [vmem:[%s1 + $0x68] sm:$0xff]
  %v41 = vld [vmem:[%s1 + $0x70] sm:$0xff]
  %v42 = vld [vmem:[%s1 + $0x78] sm:$0xff]
  %v43 = vld [vmem:[%s1 + $0x80] sm:$0xff]
  %v44 = vld [vmem:[%s1 + $0x88] sm:$0xff]
  %v45 = vld [vmem:[%s1 + $0x90] sm:$0xff]
  %v46 = vld [vmem:[%s1 + $0x98] sm:$0xff]
  %v47 = vld [vmem:[%s1 + $0xa0] sm:$0xff]
  %v48 = vld [vmem:[%s1 + $0xa8] sm:$0xff]
  %v49 = vld [vmem:[%s1 + $0xb0] sm:$0xff]
  %v50 = vld [vmem:[%s1 + $0xb8] sm:$0xff]
  %v51 = vld [vmem:[%s1 + $0xc0] sm:$0xff]
  %v52 = vld [vmem:[%s1 + $0xc8] sm:$0xff]
  %v53 = vld [vmem:[%s1 + $0xd0] sm:$0xff]
  %v54 = vld [vmem:[%s1 + $0xd8] sm:$0xff]
  %v55 = vld [vmem:[%s1 + $0xe0] sm:$0xff]
  %v56 = vld [vmem:[%s1 + $0xe8] sm:$0xff]
  %v57 = vld [vmem:[%s1 + $0xf0] sm:$0xff]
  %v58 = vld [vmem:[%s1 + $0xf8] sm:$0xff]
  %v59 = vld [vmem:[%s1 + $0x100] sm:$0xff]
  %v60 = vld [vmem:[%s1 + $0x108] sm:$0xff]
  %v61 = vld [vmem:[%s1 + $0x110] sm:$0xff]
  %v62 = vld [vmem:[%s1 + $0x118] sm:$0xff]
  %v63 = vld [vmem:[%s1 + $0x120] sm:$0xff]
  %v64 = vld [vmem:[%s1 + $0x128] sm:$0xff]
  %v65 = vld [vmem:[%s1 + $0x130] sm:$0xff]
  %v66 = vld [vmem:[%s1 + $0x138] sm:$0xff]
  %v67 = vld [vmem:[%s1 + $0x140] sm:$0xff]
  %v68 = vld [vmem:[%s1 + $0x148] sm:$0xff]
  %v69 = vld [vmem:[%s1 + $0x150] sm:$0xff]
  %v70 = vld [vmem:[%s1 + $0x158] sm:$0xff]
  %v71 = vld [vmem:[%s1 + $0x160] sm:$0xff]
  %v72 = vld [vmem:[%s1 + $0x168] sm:$0xff]
  %v73 = vld [vmem:[%s1 + $0x170] sm:$0xff]
  %v74 = vld [vmem:[%s1 + $0x178] sm:$0xff]
  %v75 = vld [vmem:[%s2] sm:$0x1]
  %v77 = vlaneseq
  %v78 = vshrl.u32 %v77, 7
  %v79 = vsub.s32 0, %v78
  %v80 = vrot.slane %v26, %v79
  %v81 = vlaneseq
  %v82 = vshrl.u32 %v81, 7
  %v83 = vsub.s32 1, %v82
  %v84 = vrot.slane %v26, %v83
  %v85 = vlaneseq
  %v86 = vshrl.u32 %v85, 7
  %v87 = vsub.s32 2, %v86
  %v88 = vrot.slane %v26, %v87
  %92 = vmatprep.subr.mxu0 0.0
  %93 = vmatpush1.msra.mxu0 %v27
  %94 = vmatprep.subr.mxu0 0.0
  %95 = vmatpush1.msra.mxu0 %v28
  %96 = vmatprep.subr.mxu0 0.0
  %97 = vmatpush1.msra.mxu0 %v29
  %98 = vmatprep.subr.mxu0 0.0
  %99 = vmatpush1.msra.mxu0 %v30
  %100 = vmatprep.subr.mxu0 0.0
  %101 = vmatpush1.msra.mxu0 %v31
  %102 = vmatprep.subr.mxu0 0.0
  %103 = vmatpush1.msra.mxu0 %v32
  %104 = vmatprep.subr.mxu0 0.0
  %105 = vmatpush1.msra.mxu0 %v33
  %106 = vmatprep.subr.mxu0 0.0
  %107 = vmatpush1.msra.mxu0 %v34
  %108 = vmatprep.subr.mxu0 0.0
  %109 = vmatpush1.msra.mxu0 %v35
  %110 = vmatprep.subr.mxu0 0.0
  %111 = vmatpush1.msra.mxu0 %v36
  %112 = vmatprep.subr.mxu0 0.0
  %113 = vmatpush1.msra.mxu0 %v37
  %114 = vmatprep.subr.mxu0 0.0
  %115 = vmatpush1.msra.mxu0 %v38
  %116 = vmatprep.subr.mxu0 0.0
  %117 = vmatpush1.msra.mxu0 %v39
  %118 = vmatprep.subr.mxu0 0.0
  %119 = vmatpush1.msra.mxu0 %v40
  %120 = vmatprep.subr.mxu0 0.0
  %121 = vmatpush1.msra.mxu0 %v41
  %122 = vmatprep.subr.mxu0 0.0
  %123 = vmatpush1.msra.mxu0 %v42
  %124 = vmatprep.subr.mxu0 0.0
  %125 = vmatpush1.msra.mxu0 %v43
  %126 = vmatprep.subr.mxu0 0.0
  %127 = vmatpush1.msra.mxu0 %v44
  %128 = vmatprep.subr.mxu0 0.0
  %129 = vmatpush1.msra.mxu0 %v45
  %130 = vmatprep.subr.mxu0 0.0
  %131 = vmatpush1.msra.mxu0 %v46
  %132 = vmatprep.subr.mxu0 0.0
  %133 = vmatpush1.msra.mxu0 %v47
  %134 = vmatprep.subr.mxu0 0.0
  %135 = vmatpush1.msra.mxu0 %v48
  %136 = vmatprep.subr.mxu0 0.0
  %137 = vmatpush1.msra.mxu0 %v49
  %138 = vmatprep.subr.mxu0 0.0
  %139 = vmatpush1.msra.mxu0 %v50
  %140 = vmatprep.subr.mxu0 0.0
  %141 = vmatpush1.msra.mxu0 %v51
  %142 = vmatprep.subr.mxu0 0.0
  %143 = vmatpush1.msra.mxu0 %v52
  %144 = vmatprep.subr.mxu0 0.0
  %145 = vmatpush1.msra.mxu0 %v53
  %146 = vmatprep.subr.mxu0 0.0
  %147 = vmatpush1.msra.mxu0 %v54
  %148 = vmatprep.subr.mxu0 0.0
  %149 = vmatpush1.msra.mxu0 %v55
  %150 = vmatprep.subr.mxu0 0.0
  %151 = vmatpush1.msra.mxu0 %v56
  %152 = vmatprep.subr.mxu0 0.0
  %153 = vmatpush1.msra.mxu0 %v57
  %154 = vmatprep.subr.mxu0 0.0
  %155 = vmatpush1.msra.mxu0 %v58
  %156 = vmatprep.mubr.f32.mxu0 %v84
  %157 = vmatmul.mubr.f32.gmra.mrb[0].mxu0 %v80
  %v158 = vpop.f32.mrb[0].mxu0
  %v159 = vadd.f32 %v75, %v158
  %v160 = vpop.f32.mrb[0].mxu0
  %161 = vdwg.mxu0
  %162 = vmatprep.subr.mxu0 0.0
  %163 = vmatpush1.msra.mxu0 %v59
  %164 = vmatprep.subr.mxu0 0.0
  %165 = vmatpush1.msra.mxu0 %v60
  %166 = vmatprep.subr.mxu0 0.0
  %167 = vmatpush1.msra.mxu0 %v61
  %168 = vmatprep.subr.mxu0 0.0
  %169 = vmatpush1.msra.mxu0 %v62
  %170 = vmatprep.subr.mxu0 0.0
  %171 = vmatpush1.msra.mxu0 %v63
  %172 = vmatprep.subr.mxu0 0.0
  %173 = vmatpush1.msra.mxu0 %v64
  %174 = vmatprep.subr.mxu0 0.0
  %175 = vmatpush1.msra.mxu0 %v65
  %176 = vmatprep.subr.mxu0 0.0
  %177 = vmatpush1.msra.mxu0 %v66
  %178 = vmatprep.subr.mxu0 0.0
  %179 = vmatpush1.msra.mxu0 %v67
  %180 = vmatprep.subr.mxu0 0.0
  %181 = vmatpush1.msra.mxu0 %v68
  %182 = vmatprep.subr.mxu0 0.0
  %183 = vmatpush1.msra.mxu0 %v69
  %184 = vmatprep.subr.mxu0 0.0
  %185 = vmatpush1.msra.mxu0 %v70
  %186 = vmatprep.subr.mxu0 0.0
  %187 = vmatpush1.msra.mxu0 %v71
  %188 = vmatprep.subr.mxu0 0.0
  %189 = vmatpush1.msra.mxu0 %v72
  %190 = vmatprep.subr.mxu0 0.0
  %191 = vmatpush1.msra.mxu0 %v73
  %192 = vmatprep.subr.mxu0 0.0
  %193 = vmatpush1.msra.mxu0 %v74
  %194 = vmatprep.subr.mxu0 0.0
  %195 = vmatpush1.msra.mxu0 0.0
  %196 = vmatprep.subr.mxu0 0.0
  %197 = vmatpush1.msra.mxu0 0.0
  %198 = vmatprep.subr.mxu0 0.0
  %199 = vmatpush1.msra.mxu0 0.0
  %200 = vmatprep.subr.mxu0 0.0
  %201 = vmatpush1.msra.mxu0 0.0
  %202 = vmatprep.subr.mxu0 0.0
  %203 = vmatpush1.msra.mxu0 0.0
  %204 = vmatprep.subr.mxu0 0.0
  %205 = vmatpush1.msra.mxu0 0.0
  %206 = vmatprep.subr.mxu0 0.0
  %207 = vmatpush1.msra.mxu0 0.0
  %208 = vmatprep.subr.mxu0 0.0
  %209 = vmatpush1.msra.mxu0 0.0
  %210 = vmatprep.subr.mxu0 0.0
  %211 = vmatpush1.msra.mxu0 0.0
  %212 = vmatprep.subr.mxu0 0.0
  %213 = vmatpush1.msra.mxu0 0.0
  %214 = vmatprep.subr.mxu0 0.0
  %215 = vmatpush1.msra.mxu0 0.0
  %216 = vmatprep.subr.mxu0 0.0
  %217 = vmatpush1.msra.mxu0 0.0
  %218 = vmatprep.subr.mxu0 0.0
  %219 = vmatpush1.msra.mxu0 0.0
  %220 = vmatprep.subr.mxu0 0.0
  %221 = vmatpush1.msra.mxu0 0.0
  %222 = vmatprep.subr.mxu0 0.0
  %223 = vmatpush1.msra.mxu0 0.0
  %224 = vmatprep.subr.mxu0 0.0
  %225 = vmatpush1.msra.mxu0 0.0
  %226 = vmatprep.mubr.f32.mxu0 0.0
  %227 = vmatmul.mubr.f32.gmra.mrb[0].mxu0 %v88
  %v228 = vpop.f32.mrb[0].mxu0
  %v229 = vadd.f32 %v159, %v228
  %v230 = vpop.f32.mrb[0].mxu0
  %231 = vdwg.mxu0
  %v232 = vmax.f32 %v229, 0.0
  %v233 = vld [vmem:[%s3] sm:$0xff]
  %v234 = vld [vmem:[%s3 + $0x8] sm:$0xff]
  %v235 = vld [vmem:[%s3 + $0x10] sm:$0xff]
  %v236 = vld [vmem:[%s3 + $0x18] sm:$0xff]
  %v237 = vld [vmem:[%s3 + $0x20] sm:$0xff]
  %v238 = vld [vmem:[%s3 + $0x28] sm:$0xff]
  %v239 = vld [vmem:[%s3 + $0x30] sm:$0xff]
  %v240 = vld [vmem:[%s3 + $0x38] sm:$0xff]
  %v241 = vld [vmem:[%s3 + $0x40] sm:$0xff]
  %v242 = vld [vmem:[%s3 + $0x48] sm:$0xff]
  %v243 = vld [vmem:[%s3 + $0x50] sm:$0xff]
  %v244 = vld [vmem:[%s3 + $0x58] sm:$0xff]
  %v245 = vld [vmem:[%s3 + $0x60] sm:$0xff]
  %v246 = vld [vmem:[%s3 + $0x68] sm:$0xff]
  %v247 = vld [vmem:[%s3 + $0x70] sm:$0xff]
  %v248 = vld [vmem:[%s3 + $0x78] sm:$0xff]
  %v249 = vld [vmem:[%s3 + $0x80] sm:$0xff]
  %v250 = vld [vmem:[%s3 + $0x88] sm:$0xff]
  %v251 = vld [vmem:[%s3 + $0x90] sm:$0xff]
  %v252 = vld [vmem:[%s3 + $0x98] sm:$0xff]
  %v253 = vld [vmem:[%s3 + $0xa0] sm:$0xff]
  %v254 = vld [vmem:[%s3 + $0xa8] sm:$0xff]
  %v255 = vld [vmem:[%s3 + $0xb0] sm:$0xff]
  %v256 = vld [vmem:[%s3 + $0xb8] sm:$0xff]
  %v257 = vld [vmem:[%s3 + $0xc0] sm:$0xff]
  %v258 = vld [vmem:[%s3 + $0xc8] sm:$0xff]
  %v259 = vld [vmem:[%s3 + $0xd0] sm:$0xff]
  %v260 = vld [vmem:[%s3 + $0xd8] sm:$0xff]
  %v261 = vld [vmem:[%s3 + $0xe0] sm:$0xff]
  %v262 = vld [vmem:[%s3 + $0xe8] sm:$0xff]
  %v263 = vld [vmem:[%s3 + $0xf0] sm:$0xff]
  %v264 = vld [vmem:[%s3 + $0xf8] sm:$0xff]
  %v265 = vld [vmem:[%s3 + $0x100] sm:$0xff]
  %v266 = vld [vmem:[%s3 + $0x108] sm:$0xff]
  %v267 = vld [vmem:[%s3 + $0x110] sm:$0xff]
  %v268 = vld [vmem:[%s3 + $0x118] sm:$0xff]
  %v269 = vld [vmem:[%s3 + $0x120] sm:$0xff]
  %v270 = vld [vmem:[%s3 + $0x128] sm:$0xff]
  %v271 = vld [vmem:[%s3 + $0x130] sm:$0xff]
  %v272 = vld [vmem:[%s3 + $0x138] sm:$0xff]
  %v273 = vld [vmem:[%s3 + $0x140] sm:$0xff]
  %v274 = vld [vmem:[%s3 + $0x148] sm:$0xff]
  %v275 = vld [vmem:[%s3 + $0x150] sm:$0xff]
  %v276 = vld [vmem:[%s3 + $0x158] sm:$0xff]
  %v277 = vld [vmem:[%s3 + $0x160] sm:$0xff]
  %v278 = vld [vmem:[%s3 + $0x168] sm:$0xff]
  %v279 = vld [vmem:[%s3 + $0x170] sm:$0xff]
  %v280 = vld [vmem:[%s3 + $0x178] sm:$0xff]
  %v281 = vld [vmem:[%s3 + $0x180] sm:$0xff]
  %v282 = vld [vmem:[%s3 + $0x188] sm:$0xff]
  %v283 = vld [vmem:[%s3 + $0x190] sm:$0xff]
  %v284 = vld [vmem:[%s3 + $0x198] sm:$0xff]
  %v285 = vld [vmem:[%s3 + $0x1a0] sm:$0xff]
  %v286 = vld [vmem:[%s3 + $0x1a8] sm:$0xff]
  %v287 = vld [vmem:[%s3 + $0x1b0] sm:$0xff]
  %v288 = vld [vmem:[%s3 + $0x1b8] sm:$0xff]
  %v289 = vld [vmem:[%s3 + $0x1c0] sm:$0xff]
  %v290 = vld [vmem:[%s3 + $0x1c8] sm:$0xff]
  %v291 = vld [vmem:[%s3 + $0x1d0] sm:$0xff]
  %v292 = vld [vmem:[%s3 + $0x1d8] sm:$0xff]
  %v293 = vld [vmem:[%s3 + $0x1e0] sm:$0xff]
  %v294 = vld [vmem:[%s3 + $0x1e8] sm:$0xff]
  %v295 = vld [vmem:[%s3 + $0x1f0] sm:$0xff]
  %v296 = vld [vmem:[%s3 + $0x1f8] sm:$0xff]
  %v297 = vld [vmem:[%s3 + $0x200] sm:$0xff]
  %v298 = vld [vmem:[%s3 + $0x208] sm:$0xff]
  %v299 = vld [vmem:[%s3 + $0x210] sm:$0xff]
  %v300 = vld [vmem:[%s3 + $0x218] sm:$0xff]
  %v301 = vld [vmem:[%s3 + $0x220] sm:$0xff]
  %v302 = vld [vmem:[%s3 + $0x228] sm:$0xff]
  %v303 = vld [vmem:[%s3 + $0x230] sm:$0xff]
  %v304 = vld [vmem:[%s3 + $0x238] sm:$0xff]
  %v305 = vld [vmem:[%s3 + $0x240] sm:$0xff]
  %v306 = vld [vmem:[%s3 + $0x248] sm:$0xff]
  %v307 = vld [vmem:[%s3 + $0x250] sm:$0xff]
  %v308 = vld [vmem:[%s3 + $0x258] sm:$0xff]
  %v309 = vld [vmem:[%s3 + $0x260] sm:$0xff]
  %v310 = vld [vmem:[%s3 + $0x268] sm:$0xff]
  %v311 = vld [vmem:[%s3 + $0x270] sm:$0xff]
  %v312 = vld [vmem:[%s3 + $0x278] sm:$0xff]
  %v313 = vld [vmem:[%s3 + $0x280] sm:$0xff]
  %v314 = vld [vmem:[%s3 + $0x288] sm:$0xff]
  %v315 = vld [vmem:[%s3 + $0x290] sm:$0xff]
  %v316 = vld [vmem:[%s3 + $0x298] sm:$0xff]
  %v317 = vld [vmem:[%s3 + $0x2a0] sm:$0xff]
  %v318 = vld [vmem:[%s3 + $0x2a8] sm:$0xff]
  %v319 = vld [vmem:[%s3 + $0x2b0] sm:$0xff]
  %v320 = vld [vmem:[%s3 + $0x2b8] sm:$0xff]
  %v321 = vld [vmem:[%s3 + $0x2c0] sm:$0xff]
  %v322 = vld [vmem:[%s3 + $0x2c8] sm:$0xff]
  %v323 = vld [vmem:[%s3 + $0x2d0] sm:$0xff]
  %v324 = vld [vmem:[%s3 + $0x2d8] sm:$0xff]
  %v325 = vld [vmem:[%s3 + $0x2e0] sm:$0xff]
  %v326 = vld [vmem:[%s3 + $0x2e8] sm:$0xff]
  %v327 = vld [vmem:[%s3 + $0x2f0] sm:$0xff]
  %v328 = vld [vmem:[%s3 + $0x2f8] sm:$0xff]
  %v329 = vld [vmem:[%s4] sm:$0xff]
  %v331 = vlaneseq
  %v332 = vshrl.u32 %v331, 7
  %v333 = vsub.s32 0, %v332
  %v334 = vrot.slane %v329, %v333
  %v335 = vlaneseq
  %v336 = vshrl.u32 %v335, 7
  %v337 = vsub.s32 1, %v336
  %v338 = vrot.slane %v329, %v337
  %v339 = vlaneseq
  %v340 = vshrl.u32 %v339, 7
  %v341 = vsub.s32 2, %v340
  %v342 = vrot.slane %v329, %v341
  %v343 = vlaneseq
  %v344 = vshrl.u32 %v343, 7
  %v345 = vsub.s32 3, %v344
  %v346 = vrot.slane %v329, %v345
  %v347 = vlaneseq
  %v348 = vshrl.u32 %v347, 7
  %v349 = vsub.s32 4, %v348
  %v350 = vrot.slane %v329, %v349
  %v351 = vlaneseq
  %v352 = vshrl.u32 %v351, 7
  %v353 = vsub.s32 5, %v352
  %v354 = vrot.slane %v329, %v353
  %v355 = vlaneseq
  %v356 = vshrl.u32 %v355, 7
  %v357 = vsub.s32 6, %v356
  %v358 = vrot.slane %v329, %v357
  %v359 = vlaneseq
  %v360 = vshrl.u32 %v359, 7
  %v361 = vsub.s32 7, %v360
  %v362 = vrot.slane %v329, %v361
  %vm371 = vcmask 785408
  %v373 = vsel %vm371, %v232, 0
  %375 = vmatprep.subr.mxu0 %v234
  %376 = vmatpush1.msra.mxu0 %v233
  %377 = vmatprep.subr.mxu0 %v242
  %378 = vmatpush1.msra.mxu0 %v241
  %379 = vmatprep.subr.mxu0 %v250
  %380 = vmatpush1.msra.mxu0 %v249
  %381 = vmatprep.subr.mxu0 %v258
  %382 = vmatpush1.msra.mxu0 %v257
  %383 = vmatprep.subr.mxu0 %v266
  %384 = vmatpush1.msra.mxu0 %v265
  %385 = vmatprep.subr.mxu0 %v274
  %386 = vmatpush1.msra.mxu0 %v273
  %387 = vmatprep.subr.mxu0 %v282
  %388 = vmatpush1.msra.mxu0 %v281
  %389 = vmatprep.subr.mxu0 %v290
  %390 = vmatpush1.msra.mxu0 %v289
  %391 = vmatprep.subr.mxu0 %v298
  %392 = vmatpush1.msra.mxu0 %v297
  %393 = vmatprep.subr.mxu0 %v306
  %394 = vmatpush1.msra.mxu0 %v305
  %395 = vmatprep.subr.mxu0 %v314
  %396 = vmatpush1.msra.mxu0 %v313
  %397 = vmatprep.subr.mxu0 %v322
  %398 = vmatpush1.msra.mxu0 %v321
  %399 = vmatprep.subr.mxu0 0.0
  %400 = vmatpush1.msra.mxu0 0.0
  %401 = vmatprep.subr.mxu0 0.0
  %402 = vmatpush1.msra.mxu0 0.0
  %403 = vmatprep.subr.mxu0 0.0
  %404 = vmatpush1.msra.mxu0 0.0
  %405 = vmatprep.subr.mxu0 0.0
  %406 = vmatpush1.msra.mxu0 0.0
  %407 = vmatprep.subr.mxu0 0.0
  %408 = vmatpush1.msra.mxu0 0.0
  %409 = vmatprep.subr.mxu0 0.0
  %410 = vmatpush1.msra.mxu0 0.0
  %411 = vmatprep.subr.mxu0 0.0
  %412 = vmatpush1.msra.mxu0 0.0
  %413 = vmatprep.subr.mxu0 0.0
  %414 = vmatpush1.msra.mxu0 0.0
  %415 = vmatprep.subr.mxu0 0.0
  %416 = vmatpush1.msra.mxu0 0.0
  %417 = vmatprep.subr.mxu0 0.0
  %418 = vmatpush1.msra.mxu0 0.0
  %419 = vmatprep.subr.mxu0 0.0
  %420 = vmatpush1.msra.mxu0 0.0
  %421 = vmatprep.subr.mxu0 0.0
  %422 = vmatpush1.msra.mxu0 0.0
  %423 = vmatprep.subr.mxu0 0.0
  %424 = vmatpush1.msra.mxu0 0.0
  %425 = vmatprep.subr.mxu0 0.0
  %426 = vmatpush1.msra.mxu0 0.0
  %427 = vmatprep.subr.mxu0 0.0
  %428 = vmatpush1.msra.mxu0 0.0
  %429 = vmatprep.subr.mxu0 0.0
  %430 = vmatpush1.msra.mxu0 0.0
  %431 = vmatprep.subr.mxu0 0.0
  %432 = vmatpush1.msra.mxu0 0.0
  %433 = vmatprep.subr.mxu0 0.0
  %434 = vmatpush1.msra.mxu0 0.0
  %435 = vmatprep.subr.mxu0 0.0
  %436 = vmatpush1.msra.mxu0 0.0
  %437 = vmatprep.subr.mxu0 0.0
  %438 = vmatpush1.msra.mxu0 0.0
  %439 = vmatprep.mubr.f32.mxu0 0.0
  %440 = vmatmul.mubr.f32.gmra.mrb[0].mxu0 %v373
  %v441 = vpop.f32.mrb[0].mxu0
  %v442 = vadd.f32 %v334, %v441
  %v443 = vpop.f32.mrb[0].mxu0
  %v444 = vadd.f32 %v338, %v443
  %445 = vdwg.mxu0
  %446 = vmatprep.subr.mxu0 %v236
  %447 = vmatpush1.msra.mxu0 %v235
  %448 = vmatprep.subr.mxu0 %v244
  %449 = vmatpush1.msra.mxu0 %v243
  %450 = vmatprep.subr.mxu0 %v252
  %451 = vmatpush1.msra.mxu0 %v251
  %452 = vmatprep.subr.mxu0 %v260
  %453 = vmatpush1.msra.mxu0 %v259
  %454 = vmatprep.subr.mxu0 %v268
  %455 = vmatpush1.msra.mxu0 %v267
  %456 = vmatprep.subr.mxu0 %v276
  %457 = vmatpush1.msra.mxu0 %v275
  %458 = vmatprep.subr.mxu0 %v284
  %459 = vmatpush1.msra.mxu0 %v283
  %460 = vmatprep.subr.mxu0 %v292
  %461 = vmatpush1.msra.mxu0 %v291
  %462 = vmatprep.subr.mxu0 %v300
  %463 = vmatpush1.msra.mxu0 %v299
  %464 = vmatprep.subr.mxu0 %v308
  %465 = vmatpush1.msra.mxu0 %v307
  %466 = vmatprep.subr.mxu0 %v316
  %467 = vmatpush1.msra.mxu0 %v315
  %468 = vmatprep.subr.mxu0 %v324
  %469 = vmatpush1.msra.mxu0 %v323
  %470 = vmatprep.subr.mxu0 0.0
  %471 = vmatpush1.msra.mxu0 0.0
  %472 = vmatprep.subr.mxu0 0.0
  %473 = vmatpush1.msra.mxu0 0.0
  %474 = vmatprep.subr.mxu0 0.0
  %475 = vmatpush1.msra.mxu0 0.0
  %476 = vmatprep.subr.mxu0 0.0
  %477 = vmatpush1.msra.mxu0 0.0
  %478 = vmatprep.subr.mxu0 0.0
  %479 = vmatpush1.msra.mxu0 0.0
  %480 = vmatprep.subr.mxu0 0.0
  %481 = vmatpush1.msra.mxu0 0.0
  %482 = vmatprep.subr.mxu0 0.0
  %483 = vmatpush1.msra.mxu0 0.0
  %484 = vmatprep.subr.mxu0 0.0
  %485 = vmatpush1.msra.mxu0 0.0
  %486 = vmatprep.subr.mxu0 0.0
  %487 = vmatpush1.msra.mxu0 0.0
  %488 = vmatprep.subr.mxu0 0.0
  %489 = vmatpush1.msra.mxu0 0.0
  %490 = vmatprep.subr.mxu0 0.0
  %491 = vmatpush1.msra.mxu0 0.0
  %492 = vmatprep.subr.mxu0 0.0
  %493 = vmatpush1.msra.mxu0 0.0
  %494 = vmatprep.subr.mxu0 0.0
  %495 = vmatpush1.msra.mxu0 0.0
  %496 = vmatprep.subr.mxu0 0.0
  %497 = vmatpush1.msra.mxu0 0.0
  %498 = vmatprep.subr.mxu0 0.0
  %499 = vmatpush1.msra.mxu0 0.0
  %500 = vmatprep.subr.mxu0 0.0
  %501 = vmatpush1.msra.mxu0 0.0
  %502 = vmatprep.subr.mxu0 0.0
  %503 = vmatpush1.msra.mxu0 0.0
  %504 = vmatprep.subr.mxu0 0.0
  %505 = vmatpush1.msra.mxu0 0.0
  %506 = vmatprep.subr.mxu0 0.0
  %507 = vmatpush1.msra.mxu0 0.0
  %508 = vmatprep.subr.mxu0 0.0
  %509 = vmatpush1.msra.mxu0 0.0
  %510 = vmatprep.mubr.f32.mxu0 0.0
  %511 = vmatmul.mubr.f32.gmra.mrb[0].mxu0 %v373
  %v512 = vpop.f32.mrb[0].mxu0
  %v513 = vadd.f32 %v342, %v512
  %v514 = vpop.f32.mrb[0].mxu0
  %v515 = vadd.f32 %v346, %v514
  %516 = vdwg.mxu0
  %517 = vmatprep.subr.mxu0 %v238
  %518 = vmatpush1.msra.mxu0 %v237
  %519 = vmatprep.subr.mxu0 %v246
  %520 = vmatpush1.msra.mxu0 %v245
  %521 = vmatprep.subr.mxu0 %v254
  %522 = vmatpush1.msra.mxu0 %v253
  %523 = vmatprep.subr.mxu0 %v262
  %524 = vmatpush1.msra.mxu0 %v261
  %525 = vmatprep.subr.mxu0 %v270
  %526 = vmatpush1.msra.mxu0 %v269
  %527 = vmatprep.subr.mxu0 %v278
  %528 = vmatpush1.msra.mxu0 %v277
  %529 = vmatprep.subr.mxu0 %v286
  %530 = vmatpush1.msra.mxu0 %v285
  %531 = vmatprep.subr.mxu0 %v294
  %532 = vmatpush1.msra.mxu0 %v293
  %533 = vmatprep.subr.mxu0 %v302
  %534 = vmatpush1.msra.mxu0 %v301
  %535 = vmatprep.subr.mxu0 %v310
  %536 = vmatpush1.msra.mxu0 %v309
  %537 = vmatprep.subr.mxu0 %v318
  %538 = vmatpush1.msra.mxu0 %v317
  %539 = vmatprep.subr.mxu0 %v326
  %540 = vmatpush1.msra.mxu0 %v325
  %541 = vmatprep.subr.mxu0 0.0
  %542 = vmatpush1.msra.mxu0 0.0
  %543 = vmatprep.subr.mxu0 0.0
  %544 = vmatpush1.msra.mxu0 0.0
  %545 = vmatprep.subr.mxu0 0.0
  %546 = vmatpush1.msra.mxu0 0.0
  %547 = vmatprep.subr.mxu0 0.0
  %548 = vmatpush1.msra.mxu0 0.0
  %549 = vmatprep.subr.mxu0 0.0
  %550 = vmatpush1.msra.mxu0 0.0
  %551 = vmatprep.subr.mxu0 0.0
  %552 = vmatpush1.msra.mxu0 0.0
  %553 = vmatprep.subr.mxu0 0.0
  %554 = vmatpush1.msra.mxu0 0.0
  %555 = vmatprep.subr.mxu0 0.0
  %556 = vmatpush1.msra.mxu0 0.0
  %557 = vmatprep.subr.mxu0 0.0
  %558 = vmatpush1.msra.mxu0 0.0
  %559 = vmatprep.subr.mxu0 0.0
  %560 = vmatpush1.msra.mxu0 0.0
  %561 = vmatprep.subr.mxu0 0.0
  %562 = vmatpush1.msra.mxu0 0.0
  %563 = vmatprep.subr.mxu0 0.0
  %564 = vmatpush1.msra.mxu0 0.0
  %565 = vmatprep.subr.mxu0 0.0
  %566 = vmatpush1.msra.mxu0 0.0
  %567 = vmatprep.subr.mxu0 0.0
  %568 = vmatpush1.msra.mxu0 0.0
  %569 = vmatprep.subr.mxu0 0.0
  %570 = vmatpush1.msra.mxu0 0.0
  %571 = vmatprep.subr.mxu0 0.0
  %572 = vmatpush1.msra.mxu0 0.0
  %573 = vmatprep.subr.mxu0 0.0
  %574 = vmatpush1.msra.mxu0 0.0
  %575 = vmatprep.subr.mxu0 0.0
  %576 = vmatpush1.msra.mxu0 0.0
  %577 = vmatprep.subr.mxu0 0.0
  %578 = vmatpush1.msra.mxu0 0.0
  %579 = vmatprep.subr.mxu0 0.0
  %580 = vmatpush1.msra.mxu0 0.0
  %581 = vmatprep.mubr.f32.mxu0 0.0
  %582 = vmatmul.mubr.f32.gmra.mrb[0].mxu0 %v373
  %v583 = vpop.f32.mrb[0].mxu0
  %v584 = vadd.f32 %v350, %v583
  %v585 = vpop.f32.mrb[0].mxu0
  %v586 = vadd.f32 %v354, %v585
  %587 = vdwg.mxu0
  %588 = vmatprep.subr.mxu0 %v240
  %589 = vmatpush1.msra.mxu0 %v239
  %590 = vmatprep.subr.mxu0 %v248
  %591 = vmatpush1.msra.mxu0 %v247
  %592 = vmatprep.subr.mxu0 %v256
  %593 = vmatpush1.msra.mxu0 %v255
  %594 = vmatprep.subr.mxu0 %v264
  %595 = vmatpush1.msra.mxu0 %v263
  %596 = vmatprep.subr.mxu0 %v272
  %597 = vmatpush1.msra.mxu0 %v271
  %598 = vmatprep.subr.mxu0 %v280
  %599 = vmatpush1.msra.mxu0 %v279
  %600 = vmatprep.subr.mxu0 %v288
  %601 = vmatpush1.msra.mxu0 %v287
  %602 = vmatprep.subr.mxu0 %v296
  %603 = vmatpush1.msra.mxu0 %v295
  %604 = vmatprep.subr.mxu0 %v304
  %605 = vmatpush1.msra.mxu0 %v303
  %606 = vmatprep.subr.mxu0 %v312
  %607 = vmatpush1.msra.mxu0 %v311
  %608 = vmatprep.subr.mxu0 %v320
  %609 = vmatpush1.msra.mxu0 %v319
  %610 = vmatprep.subr.mxu0 %v328
  %611 = vmatpush1.msra.mxu0 %v327
  %612 = vmatprep.subr.mxu0 0.0
  %613 = vmatpush1.msra.mxu0 0.0
  %614 = vmatprep.subr.mxu0 0.0
  %615 = vmatpush1.msra.mxu0 0.0
  %616 = vmatprep.subr.mxu0 0.0
  %617 = vmatpush1.msra.mxu0 0.0
  %618 = vmatprep.subr.mxu0 0.0
  %619 = vmatpush1.msra.mxu0 0.0
  %620 = vmatprep.subr.mxu0 0.0
  %621 = vmatpush1.msra.mxu0 0.0
  %622 = vmatprep.subr.mxu0 0.0
  %623 = vmatpush1.msra.mxu0 0.0
  %624 = vmatprep.subr.mxu0 0.0
  %625 = vmatpush1.msra.mxu0 0.0
  %626 = vmatprep.subr.mxu0 0.0
  %627 = vmatpush1.msra.mxu0 0.0
  %628 = vmatprep.subr.mxu0 0.0
  %629 = vmatpush1.msra.mxu0 0.0
  %630 = vmatprep.subr.mxu0 0.0
  %631 = vmatpush1.msra.mxu0 0.0
  %632 = vmatprep.subr.mxu0 0.0
  %633 = vmatpush1.msra.mxu0 0.0
  %634 = vmatprep.subr.mxu0 0.0
  %635 = vmatpush1.msra.mxu0 0.0
  %636 = vmatprep.subr.mxu0 0.0
  %637 = vmatpush1.msra.mxu0 0.0
  %638 = vmatprep.subr.mxu0 0.0
  %639 = vmatpush1.msra.mxu0 0.0
  %640 = vmatprep.subr.mxu0 0.0
  %641 = vmatpush1.msra.mxu0 0.0
  %642 = vmatprep.subr.mxu0 0.0
  %643 = vmatpush1.msra.mxu0 0.0
  %644 = vmatprep.subr.mxu0 0.0
  %645 = vmatpush1.msra.mxu0 0.0
  %646 = vmatprep.subr.mxu0 0.0
  %647 = vmatpush1.msra.mxu0 0.0
  %648 = vmatprep.subr.mxu0 0.0
  %649 = vmatpush1.msra.mxu0 0.0
  %650 = vmatprep.subr.mxu0 0.0
  %651 = vmatpush1.msra.mxu0 0.0
  %652 = vmatprep.mubr.f32.mxu0 0.0
  %653 = vmatmul.mubr.f32.gmra.mrb[0].mxu0 %v373
  %v654 = vpop.f32.mrb[0].mxu0
  %v655 = vadd.f32 %v358, %v654
  %v656 = vpop.f32.mrb[0].mxu0
  %v657 = vadd.f32 %v362, %v656
  %658 = vdwg.mxu0
  %v659 = vmax.f32 %v442, 0.0
  %v660 = vmax.f32 %v444, 0.0
  %v661 = vmax.f32 %v513, 0.0
  %v662 = vmax.f32 %v515, 0.0
  %v663 = vmax.f32 %v584, 0.0
  %v664 = vmax.f32 %v586, 0.0
  %v665 = vmax.f32 %v655, 0.0
  %v666 = vmax.f32 %v657, 0.0
  %v667 = vld [vmem:[%s5] sm:$0xff]
  %v668 = vld [vmem:[%s5 + $0x8] sm:$0xff]
  %v669 = vld [vmem:[%s5 + $0x10] sm:$0xff]
  %v670 = vld [vmem:[%s5 + $0x18] sm:$0xff]
  %v671 = vld [vmem:[%s5 + $0x20] sm:$0xff]
  %v672 = vld [vmem:[%s5 + $0x28] sm:$0xff]
  %v673 = vld [vmem:[%s5 + $0x30] sm:$0xff]
  %v674 = vld [vmem:[%s5 + $0x38] sm:$0xff]
  %v675 = vld [vmem:[%s5 + $0x40] sm:$0xff]
  %v676 = vld [vmem:[%s5 + $0x48] sm:$0xff]
  %v677 = vld [vmem:[%s5 + $0x50] sm:$0xff]
  %v678 = vld [vmem:[%s5 + $0x58] sm:$0xff]
  %v679 = vld [vmem:[%s5 + $0x60] sm:$0xff]
  %v680 = vld [vmem:[%s5 + $0x68] sm:$0xff]
  %v681 = vld [vmem:[%s5 + $0x70] sm:$0xff]
  %v682 = vld [vmem:[%s5 + $0x78] sm:$0xff]
  %v683 = vld [vmem:[%s5 + $0x80] sm:$0xff]
  %v684 = vld [vmem:[%s5 + $0x88] sm:$0xff]
  %v685 = vld [vmem:[%s5 + $0x90] sm:$0xff]
  %v686 = vld [vmem:[%s5 + $0x98] sm:$0xff]
  %v687 = vld [vmem:[%s5 + $0xa0] sm:$0xff]
  %v688 = vld [vmem:[%s5 + $0xa8] sm:$0xff]
  %v689 = vld [vmem:[%s5 + $0xb0] sm:$0xff]
  %v690 = vld [vmem:[%s5 + $0xb8] sm:$0xff]
  %v691 = vld [vmem:[%s5 + $0xc0] sm:$0xff]
  %v692 = vld [vmem:[%s5 + $0xc8] sm:$0xff]
  %v693 = vld [vmem:[%s5 + $0xd0] sm:$0xff]
  %v694 = vld [vmem:[%s5 + $0xd8] sm:$0xff]
  %v695 = vld [vmem:[%s5 + $0xe0] sm:$0xff]
  %v696 = vld [vmem:[%s5 + $0xe8] sm:$0xff]
  %v697 = vld [vmem:[%s5 + $0xf0] sm:$0xff]
  %v698 = vld [vmem:[%s5 + $0xf8] sm:$0xff]
  %v699 = vld [vmem:[%s5 + $0x100] sm:$0xff]
  %v700 = vld [vmem:[%s5 + $0x108] sm:$0xff]
  %v701 = vld [vmem:[%s5 + $0x110] sm:$0xff]
  %v702 = vld [vmem:[%s5 + $0x118] sm:$0xff]
  %v703 = vld [vmem:[%s5 + $0x120] sm:$0xff]
  %v704 = vld [vmem:[%s5 + $0x128] sm:$0xff]
  %v705 = vld [vmem:[%s5 + $0x130] sm:$0xff]
  %v706 = vld [vmem:[%s5 + $0x138] sm:$0xff]
  %v707 = vld [vmem:[%s5 + $0x140] sm:$0xff]
  %v708 = vld [vmem:[%s5 + $0x148] sm:$0xff]
  %v709 = vld [vmem:[%s5 + $0x150] sm:$0xff]
  %v710 = vld [vmem:[%s5 + $0x158] sm:$0xff]
  %v711 = vld [vmem:[%s5 + $0x160] sm:$0xff]
  %v712 = vld [vmem:[%s5 + $0x168] sm:$0xff]
  %v713 = vld [vmem:[%s5 + $0x170] sm:$0xff]
  %v714 = vld [vmem:[%s5 + $0x178] sm:$0xff]
  %v715 = vld [vmem:[%s5 + $0x180] sm:$0xff]
  %v716 = vld [vmem:[%s5 + $0x188] sm:$0xff]
  %v717 = vld [vmem:[%s5 + $0x190] sm:$0xff]
  %v718 = vld [vmem:[%s5 + $0x198] sm:$0xff]
  %v719 = vld [vmem:[%s5 + $0x1a0] sm:$0xff]
  %v720 = vld [vmem:[%s5 + $0x1a8] sm:$0xff]
  %v721 = vld [vmem:[%s5 + $0x1b0] sm:$0xff]
  %v722 = vld [vmem:[%s5 + $0x1b8] sm:$0xff]
  %v723 = vld [vmem:[%s5 + $0x1c0] sm:$0xff]
  %v724 = vld [vmem:[%s5 + $0x1c8] sm:$0xff]
  %v725 = vld [vmem:[%s5 + $0x1d0] sm:$0xff]
  %v726 = vld [vmem:[%s5 + $0x1d8] sm:$0xff]
  %v727 = vld [vmem:[%s5 + $0x1e0] sm:$0xff]
  %v728 = vld [vmem:[%s5 + $0x1e8] sm:$0xff]
  %v729 = vld [vmem:[%s5 + $0x1f0] sm:$0xff]
  %v730 = vld [vmem:[%s5 + $0x1f8] sm:$0xff]
  %v731 = vld [vmem:[%s5 + $0x200] sm:$0xff]
  %v732 = vld [vmem:[%s5 + $0x208] sm:$0xff]
  %v733 = vld [vmem:[%s5 + $0x210] sm:$0xff]
  %v734 = vld [vmem:[%s5 + $0x218] sm:$0xff]
  %v735 = vld [vmem:[%s5 + $0x220] sm:$0xff]
  %v736 = vld [vmem:[%s5 + $0x228] sm:$0xff]
  %v737 = vld [vmem:[%s5 + $0x230] sm:$0xff]
  %v738 = vld [vmem:[%s5 + $0x238] sm:$0xff]
  %v739 = vld [vmem:[%s5 + $0x240] sm:$0xff]
  %v740 = vld [vmem:[%s5 + $0x248] sm:$0xff]
  %v741 = vld [vmem:[%s5 + $0x250] sm:$0xff]
  %v742 = vld [vmem:[%s5 + $0x258] sm:$0xff]
  %v743 = vld [vmem:[%s5 + $0x260] sm:$0xff]
  %v744 = vld [vmem:[%s5 + $0x268] sm:$0xff]
  %v745 = vld [vmem:[%s5 + $0x270] sm:$0xff]
  %v746 = vld [vmem:[%s5 + $0x278] sm:$0xff]
  %v747 = vld [vmem:[%s5 + $0x280] sm:$0xff]
  %v748 = vld [vmem:[%s5 + $0x288] sm:$0xff]
  %v749 = vld [vmem:[%s5 + $0x290] sm:$0xff]
  %v750 = vld [vmem:[%s5 + $0x298] sm:$0xff]
  %v751 = vld [vmem:[%s5 + $0x2a0] sm:$0xff]
  %v752 = vld [vmem:[%s5 + $0x2a8] sm:$0xff]
  %v753 = vld [vmem:[%s5 + $0x2b0] sm:$0xff]
  %v754 = vld [vmem:[%s5 + $0x2b8] sm:$0xff]
  %v755 = vld [vmem:[%s5 + $0x2c0] sm:$0xff]
  %v756 = vld [vmem:[%s5 + $0x2c8] sm:$0xff]
  %v757 = vld [vmem:[%s5 + $0x2d0] sm:$0xff]
  %v758 = vld [vmem:[%s5 + $0x2d8] sm:$0xff]
  %v759 = vld [vmem:[%s5 + $0x2e0] sm:$0xff]
  %v760 = vld [vmem:[%s5 + $0x2e8] sm:$0xff]
  %v761 = vld [vmem:[%s5 + $0x2f0] sm:$0xff]
  %v762 = vld [vmem:[%s5 + $0x2f8] sm:$0xff]
  %v763 = vld [vmem:[%s5 + $0x300] sm:$0xff]
  %v764 = vld [vmem:[%s5 + $0x308] sm:$0xff]
  %v765 = vld [vmem:[%s5 + $0x310] sm:$0xff]
  %v766 = vld [vmem:[%s5 + $0x318] sm:$0xff]
  %v767 = vld [vmem:[%s5 + $0x320] sm:$0xff]
  %v768 = vld [vmem:[%s5 + $0x328] sm:$0xff]
  %v769 = vld [vmem:[%s5 + $0x330] sm:$0xff]
  %v770 = vld [vmem:[%s5 + $0x338] sm:$0xff]
  %v771 = vld [vmem:[%s5 + $0x340] sm:$0xff]
  %v772 = vld [vmem:[%s5 + $0x348] sm:$0xff]
  %v773 = vld [vmem:[%s5 + $0x350] sm:$0xff]
  %v774 = vld [vmem:[%s5 + $0x358] sm:$0xff]
  %v775 = vld [vmem:[%s5 + $0x360] sm:$0xff]
  %v776 = vld [vmem:[%s5 + $0x368] sm:$0xff]
  %v777 = vld [vmem:[%s5 + $0x370] sm:$0xff]
  %v778 = vld [vmem:[%s5 + $0x378] sm:$0xff]
  %v779 = vld [vmem:[%s5 + $0x380] sm:$0xff]
  %v780 = vld [vmem:[%s5 + $0x388] sm:$0xff]
  %v781 = vld [vmem:[%s5 + $0x390] sm:$0xff]
  %v782 = vld [vmem:[%s5 + $0x398] sm:$0xff]
  %v783 = vld [vmem:[%s5 + $0x3a0] sm:$0xff]
  %v784 = vld [vmem:[%s5 + $0x3a8] sm:$0xff]
  %v785 = vld [vmem:[%s5 + $0x3b0] sm:$0xff]
  %v786 = vld [vmem:[%s5 + $0x3b8] sm:$0xff]
  %v787 = vld [vmem:[%s6] sm:$0x1]
  %vm788 = vcmask 523264
  %v790 = vsel %vm788, %v666, 0
  %792 = vmatprep.subr.mxu0 0.0
  %793 = vmatpush1.msra.mxu0 %v667
  %794 = vmatprep.subr.mxu0 0.0
  %795 = vmatpush1.msra.mxu0 %v668
  %796 = vmatprep.subr.mxu0 0.0
  %797 = vmatpush1.msra.mxu0 %v669
  %798 = vmatprep.subr.mxu0 0.0
  %799 = vmatpush1.msra.mxu0 %v670
  %800 = vmatprep.subr.mxu0 0.0
  %801 = vmatpush1.msra.mxu0 %v671
  %802 = vmatprep.subr.mxu0 0.0
  %803 = vmatpush1.msra.mxu0 %v672
  %804 = vmatprep.subr.mxu0 0.0
  %805 = vmatpush1.msra.mxu0 %v673
  %806 = vmatprep.subr.mxu0 0.0
  %807 = vmatpush1.msra.mxu0 %v674
  %808 = vmatprep.subr.mxu0 0.0
  %809 = vmatpush1.msra.mxu0 %v675
  %810 = vmatprep.subr.mxu0 0.0
  %811 = vmatpush1.msra.mxu0 %v676
  %812 = vmatprep.subr.mxu0 0.0
  %813 = vmatpush1.msra.mxu0 %v677
  %814 = vmatprep.subr.mxu0 0.0
  %815 = vmatpush1.msra.mxu0 %v678
  %816 = vmatprep.subr.mxu0 0.0
  %817 = vmatpush1.msra.mxu0 %v679
  %818 = vmatprep.subr.mxu0 0.0
  %819 = vmatpush1.msra.mxu0 %v680
  %820 = vmatprep.subr.mxu0 0.0
  %821 = vmatpush1.msra.mxu0 %v681
  %822 = vmatprep.subr.mxu0 0.0
  %823 = vmatpush1.msra.mxu0 %v682
  %824 = vmatprep.subr.mxu0 0.0
  %825 = vmatpush1.msra.mxu0 %v683
  %826 = vmatprep.subr.mxu0 0.0
  %827 = vmatpush1.msra.mxu0 %v684
  %828 = vmatprep.subr.mxu0 0.0
  %829 = vmatpush1.msra.mxu0 %v685
  %830 = vmatprep.subr.mxu0 0.0
  %831 = vmatpush1.msra.mxu0 %v686
  %832 = vmatprep.subr.mxu0 0.0
  %833 = vmatpush1.msra.mxu0 %v687
  %834 = vmatprep.subr.mxu0 0.0
  %835 = vmatpush1.msra.mxu0 %v688
  %836 = vmatprep.subr.mxu0 0.0
  %837 = vmatpush1.msra.mxu0 %v689
  %838 = vmatprep.subr.mxu0 0.0
  %839 = vmatpush1.msra.mxu0 %v690
  %840 = vmatprep.subr.mxu0 0.0
  %841 = vmatpush1.msra.mxu0 %v691
  %842 = vmatprep.subr.mxu0 0.0
  %843 = vmatpush1.msra.mxu0 %v692
  %844 = vmatprep.subr.mxu0 0.0
  %845 = vmatpush1.msra.mxu0 %v693
  %846 = vmatprep.subr.mxu0 0.0
  %847 = vmatpush1.msra.mxu0 %v694
  %848 = vmatprep.subr.mxu0 0.0
  %849 = vmatpush1.msra.mxu0 %v695
  %850 = vmatprep.subr.mxu0 0.0
  %851 = vmatpush1.msra.mxu0 %v696
  %852 = vmatprep.subr.mxu0 0.0
  %853 = vmatpush1.msra.mxu0 %v697
  %854 = vmatprep.subr.mxu0 0.0
  %855 = vmatpush1.msra.mxu0 %v698
  %856 = vmatprep.mubr.f32.mxu0 %v660
  %857 = vmatmul.mubr.f32.gmra.mrb[0].mxu0 %v659
  %v858 = vpop.f32.mrb[0].mxu0
  %v859 = vadd.f32 %v787, %v858
  %v860 = vpop.f32.mrb[0].mxu0
  %861 = vdwg.mxu0
  %862 = vmatprep.subr.mxu0 0.0
  %863 = vmatpush1.msra.mxu0 %v699
  %864 = vmatprep.subr.mxu0 0.0
  %865 = vmatpush1.msra.mxu0 %v700
  %866 = vmatprep.subr.mxu0 0.0
  %867 = vmatpush1.msra.mxu0 %v701
  %868 = vmatprep.subr.mxu0 0.0
  %869 = vmatpush1.msra.mxu0 %v702
  %870 = vmatprep.subr.mxu0 0.0
  %871 = vmatpush1.msra.mxu0 %v703
  %872 = vmatprep.subr.mxu0 0.0
  %873 = vmatpush1.msra.mxu0 %v704
  %874 = vmatprep.subr.mxu0 0.0
  %875 = vmatpush1.msra.mxu0 %v705
  %876 = vmatprep.subr.mxu0 0.0
  %877 = vmatpush1.msra.mxu0 %v706
  %878 = vmatprep.subr.mxu0 0.0
  %879 = vmatpush1.msra.mxu0 %v707
  %880 = vmatprep.subr.mxu0 0.0
  %881 = vmatpush1.msra.mxu0 %v708
  %882 = vmatprep.subr.mxu0 0.0
  %883 = vmatpush1.msra.mxu0 %v709
  %884 = vmatprep.subr.mxu0 0.0
  %885 = vmatpush1.msra.mxu0 %v710
  %886 = vmatprep.subr.mxu0 0.0
  %887 = vmatpush1.msra.mxu0 %v711
  %888 = vmatprep.subr.mxu0 0.0
  %889 = vmatpush1.msra.mxu0 %v712
  %890 = vmatprep.subr.mxu0 0.0
  %891 = vmatpush1.msra.mxu0 %v713
  %892 = vmatprep.subr.mxu0 0.0
  %893 = vmatpush1.msra.mxu0 %v714
  %894 = vmatprep.subr.mxu0 0.0
  %895 = vmatpush1.msra.mxu0 %v715
  %896 = vmatprep.subr.mxu0 0.0
  %897 = vmatpush1.msra.mxu0 %v716
  %898 = vmatprep.subr.mxu0 0.0
  %899 = vmatpush1.msra.mxu0 %v717
  %900 = vmatprep.subr.mxu0 0.0
  %901 = vmatpush1.msra.mxu0 %v718
  %902 = vmatprep.subr.mxu0 0.0
  %903 = vmatpush1.msra.mxu0 %v719
  %904 = vmatprep.subr.mxu0 0.0
  %905 = vmatpush1.msra.mxu0 %v720
  %906 = vmatprep.subr.mxu0 0.0
  %907 = vmatpush1.msra.mxu0 %v721
  %908 = vmatprep.subr.mxu0 0.0
  %909 = vmatpush1.msra.mxu0 %v722
  %910 = vmatprep.subr.mxu0 0.0
  %911 = vmatpush1.msra.mxu0 %v723
  %912 = vmatprep.subr.mxu0 0.0
  %913 = vmatpush1.msra.mxu0 %v724
  %914 = vmatprep.subr.mxu0 0.0
  %915 = vmatpush1.msra.mxu0 %v725
  %916 = vmatprep.subr.mxu0 0.0
  %917 = vmatpush1.msra.mxu0 %v726
  %918 = vmatprep.subr.mxu0 0.0
  %919 = vmatpush1.msra.mxu0 %v727
  %920 = vmatprep.subr.mxu0 0.0
  %921 = vmatpush1.msra.mxu0 %v728
  %922 = vmatprep.subr.mxu0 0.0
  %923 = vmatpush1.msra.mxu0 %v729
  %924 = vmatprep.subr.mxu0 0.0
  %925 = vmatpush1.msra.mxu0 %v730
  %926 = vmatprep.mubr.f32.mxu0 %v662
  %927 = vmatmul.mubr.f32.gmra.mrb[0].mxu0 %v661
  %v928 = vpop.f32.mrb[0].mxu0
  %v929 = vadd.f32 %v859, %v928
  %v930 = vpop.f32.mrb[0].mxu0
  %931 = vdwg.mxu0
  %932 = vmatprep.subr.mxu0 0.0
  %933 = vmatpush1.msra.mxu0 %v731
  %934 = vmatprep.subr.mxu0 0.0
  %935 = vmatpush1.msra.mxu0 %v732
  %936 = vmatprep.subr.mxu0 0.0
  %937 = vmatpush1.msra.mxu0 %v733
  %938 = vmatprep.subr.mxu0 0.0
  %939 = vmatpush1.msra.mxu0 %v734
  %940 = vmatprep.subr.mxu0 0.0
  %941 = vmatpush1.msra.mxu0 %v735
  %942 = vmatprep.subr.mxu0 0.0
  %943 = vmatpush1.msra.mxu0 %v736
  %944 = vmatprep.subr.mxu0 0.0
  %945 = vmatpush1.msra.mxu0 %v737
  %946 = vmatprep.subr.mxu0 0.0
  %947 = vmatpush1.msra.mxu0 %v738
  %948 = vmatprep.subr.mxu0 0.0
  %949 = vmatpush1.msra.mxu0 %v739
  %950 = vmatprep.subr.mxu0 0.0
  %951 = vmatpush1.msra.mxu0 %v740
  %952 = vmatprep.subr.mxu0 0.0
  %953 = vmatpush1.msra.mxu0 %v741
  %954 = vmatprep.subr.mxu0 0.0
  %955 = vmatpush1.msra.mxu0 %v742
  %956 = vmatprep.subr.mxu0 0.0
  %957 = vmatpush1.msra.mxu0 %v743
  %958 = vmatprep.subr.mxu0 0.0
  %959 = vmatpush1.msra.mxu0 %v744
  %960 = vmatprep.subr.mxu0 0.0
  %961 = vmatpush1.msra.mxu0 %v745
  %962 = vmatprep.subr.mxu0 0.0
  %963 = vmatpush1.msra.mxu0 %v746
  %964 = vmatprep.subr.mxu0 0.0
  %965 = vmatpush1.msra.mxu0 %v747
  %966 = vmatprep.subr.mxu0 0.0
  %967 = vmatpush1.msra.mxu0 %v748
  %968 = vmatprep.subr.mxu0 0.0
  %969 = vmatpush1.msra.mxu0 %v749
  %970 = vmatprep.subr.mxu0 0.0
  %971 = vmatpush1.msra.mxu0 %v750
  %972 = vmatprep.subr.mxu0 0.0
  %973 = vmatpush1.msra.mxu0 %v751
  %974 = vmatprep.subr.mxu0 0.0
  %975 = vmatpush1.msra.mxu0 %v752
  %976 = vmatprep.subr.mxu0 0.0
  %977 = vmatpush1.msra.mxu0 %v753
  %978 = vmatprep.subr.mxu0 0.0
  %979 = vmatpush1.msra.mxu0 %v754
  %980 = vmatprep.subr.mxu0 0.0
  %981 = vmatpush1.msra.mxu0 %v755
  %982 = vmatprep.subr.mxu0 0.0
  %983 = vmatpush1.msra.mxu0 %v756
  %984 = vmatprep.subr.mxu0 0.0
  %985 = vmatpush1.msra.mxu0 %v757
  %986 = vmatprep.subr.mxu0 0.0
  %987 = vmatpush1.msra.mxu0 %v758
  %988 = vmatprep.subr.mxu0 0.0
  %989 = vmatpush1.msra.mxu0 %v759
  %990 = vmatprep.subr.mxu0 0.0
  %991 = vmatpush1.msra.mxu0 %v760
  %992 = vmatprep.subr.mxu0 0.0
  %993 = vmatpush1.msra.mxu0 %v761
  %994 = vmatprep.subr.mxu0 0.0
  %995 = vmatpush1.msra.mxu0 %v762
  %996 = vmatprep.mubr.f32.mxu0 %v664
  %997 = vmatmul.mubr.f32.gmra.mrb[0].mxu0 %v663
  %v998 = vpop.f32.mrb[0].mxu0
  %v999 = vadd.f32 %v929, %v998
  %v1000 = vpop.f32.mrb[0].mxu0
  %1001 = vdwg.mxu0
  %1002 = vmatprep.subr.mxu0 0.0
  %1003 = vmatpush1.msra.mxu0 %v763
  %1004 = vmatprep.subr.mxu0 0.0
  %1005 = vmatpush1.msra.mxu0 %v764
  %1006 = vmatprep.subr.mxu0 0.0
  %1007 = vmatpush1.msra.mxu0 %v765
  %1008 = vmatprep.subr.mxu0 0.0
  %1009 = vmatpush1.msra.mxu0 %v766
  %1010 = vmatprep.subr.mxu0 0.0
  %1011 = vmatpush1.msra.mxu0 %v767
  %1012 = vmatprep.subr.mxu0 0.0
  %1013 = vmatpush1.msra.mxu0 %v768
  %1014 = vmatprep.subr.mxu0 0.0
  %1015 = vmatpush1.msra.mxu0 %v769
  %1016 = vmatprep.subr.mxu0 0.0
  %1017 = vmatpush1.msra.mxu0 %v770
  %1018 = vmatprep.subr.mxu0 0.0
  %1019 = vmatpush1.msra.mxu0 %v771
  %1020 = vmatprep.subr.mxu0 0.0
  %1021 = vmatpush1.msra.mxu0 %v772
  %1022 = vmatprep.subr.mxu0 0.0
  %1023 = vmatpush1.msra.mxu0 %v773
  %1024 = vmatprep.subr.mxu0 0.0
  %1025 = vmatpush1.msra.mxu0 %v774
  %1026 = vmatprep.subr.mxu0 0.0
  %1027 = vmatpush1.msra.mxu0 %v775
  %1028 = vmatprep.subr.mxu0 0.0
  %1029 = vmatpush1.msra.mxu0 %v776
  %1030 = vmatprep.subr.mxu0 0.0
  %1031 = vmatpush1.msra.mxu0 %v777
  %1032 = vmatprep.subr.mxu0 0.0
  %1033 = vmatpush1.msra.mxu0 %v778
  %1034 = vmatprep.subr.mxu0 0.0
  %1035 = vmatpush1.msra.mxu0 %v779
  %1036 = vmatprep.subr.mxu0 0.0
  %1037 = vmatpush1.msra.mxu0 %v780
  %1038 = vmatprep.subr.mxu0 0.0
  %1039 = vmatpush1.msra.mxu0 %v781
  %1040 = vmatprep.subr.mxu0 0.0
  %1041 = vmatpush1.msra.mxu0 %v782
  %1042 = vmatprep.subr.mxu0 0.0
  %1043 = vmatpush1.msra.mxu0 %v783
  %1044 = vmatprep.subr.mxu0 0.0
  %1045 = vmatpush1.msra.mxu0 %v784
  %1046 = vmatprep.subr.mxu0 0.0
  %1047 = vmatpush1.msra.mxu0 %v785
  %1048 = vmatprep.subr.mxu0 0.0
  %1049 = vmatpush1.msra.mxu0 %v786
  %1050 = vmatprep.subr.mxu0 0.0
  %1051 = vmatpush1.msra.mxu0 0.0
  %1052 = vmatprep.subr.mxu0 0.0
  %1053 = vmatpush1.msra.mxu0 0.0
  %1054 = vmatprep.subr.mxu0 0.0
  %1055 = vmatpush1.msra.mxu0 0.0
  %1056 = vmatprep.subr.mxu0 0.0
  %1057 = vmatpush1.msra.mxu0 0.0
  %1058 = vmatprep.subr.mxu0 0.0
  %1059 = vmatpush1.msra.mxu0 0.0
  %1060 = vmatprep.subr.mxu0 0.0
  %1061 = vmatpush1.msra.mxu0 0.0
  %1062 = vmatprep.subr.mxu0 0.0
  %1063 = vmatpush1.msra.mxu0 0.0
  %1064 = vmatprep.subr.mxu0 0.0
  %1065 = vmatpush1.msra.mxu0 0.0
  %1066 = vmatprep.mubr.f32.mxu0 %v790
  %1067 = vmatmul.mubr.f32.gmra.mrb[0].mxu0 %v665
  %v1068 = vpop.f32.mrb[0].mxu0
  %v1069 = vadd.f32 %v999, %v1068
  %v1070 = vpop.f32.mrb[0].mxu0
  %1071 = vdwg.mxu0
  %vm1072 = vcmask 253952
  %1073 = vst.msk [vmem:[%s7] sm:$0x1] %vm1072, %v1069
  // Predicated region
  $region30: #{network_forward.1} parent=0 // pred_check
    _
  $region31: #{network_forward.1} parent=0 // pred_check_branch
    %1075 = sbr.rel (0) target = $region33
  $region32: #{network_forward.1} parent=0 // pred_region
    _
  $region33: #{network_forward.1} parent=0 // pred_fallthru
    _
  // Predicated region
  $region34: #{network_forward.1} parent=0 // pred_check
    _
  $region35: #{network_forward.1} parent=0 // pred_check_branch
    %1077 = sbr.rel (0) target = $region37
  $region36: #{network_forward.1} parent=0 // pred_region
    _
  $region37: #{network_forward.1} parent=0 // pred_fallthru
    _

</llo_original>
